<compile_context>
chip_gen: v5e
topology: v5e:2x2
jax: 0.10.0
libtpu: 0.0.40
codegen_flags: <defaults>
</compile_context>

<pallas_src>
import functools

import jax
import jax.numpy as jnp
from jax import lax
from jax.experimental import pallas as pl
from jax.experimental.pallas import tpu as pltpu


def _transition_kernel(acts_ref, w1_ref, w2h_ref, b_ref, out_ref,
                       *, z_dim, u_dim, h_dim):
    acts = acts_ref[...]                                  # (b, 3z + u)
    zbar = acts[:, 0:z_dim]
    mu = acts[:, z_dim:2 * z_dim]
    logvar = acts[:, 2 * z_dim:3 * z_dim]
    u = acts[:, 3 * z_dim:]

    b1 = b_ref[:, 0:h_dim]                                # (1, h)
    b2 = b_ref[:, h_dim:2 * h_dim]                        # (1, h)
    bh = b_ref[:, 2 * h_dim:]                             # (1, n_heads)

    # --- trunk layer 1 on the VPU: K = z_dim is tiny, skip the MXU round-trip
    h1 = b1
    for k in range(z_dim):
        h1 = h1 + zbar[:, k:k + 1] * w1_ref[k:k + 1, :]
    h1 = jnp.maximum(h1, 0.0)                             # (b, h)

    # --- trunk layer 2 (MXU) ; W2 is the first h_dim lanes of the fused buffer
    h2 = jnp.maximum(
        jnp.dot(h1, w2h_ref[:, 0:h_dim], preferred_element_type=jnp.float32)
        + b2, 0.0)

    # --- single fused head matmul: columns = [ o | A_v | A_r | B action-major ]
    heads = (jnp.dot(h2, w2h_ref[:, h_dim:], preferred_element_type=jnp.float32)
             + bh)
    o_t = heads[:, 0:z_dim]
    vr = jax.nn.sigmoid(heads[:, z_dim:3 * z_dim])        # contiguous [v | r]
    v_t = vr[:, 0:z_dim]
    r_t = vr[:, z_dim:]
    B_flat = heads[:, 3 * z_dim:]                         # (b, u_dim * z_dim)

    # A_t @ mu = (I + v r^T) mu = mu + v * (r . mu)
    r_dot_mu = jnp.sum(r_t * mu, axis=1, keepdims=True)
    a_mu = mu + v_t * r_dot_mu

    # B_t @ u : static lane slices over the action-major B columns (VPU only).
    b_u = jnp.zeros_like(o_t)
    for j in range(u_dim):
        b_u = b_u + B_flat[:, j * z_dim:(j + 1) * z_dim] * u[:, j:j + 1]

    mean = a_mu + b_u + o_t

    # --- packed output writes (single lane-dense 2-D slab, no concatenates)
    out_ref[:, 0:z_dim] = mean
    out_ref[:, z_dim:3 * z_dim] = vr                      # reuse [v|r] lanes as-is

    # rank-1 closed forms, emitted row-by-row in flattened row-major order:
    #   A[i, j]   = delta_ij + v_i r_j
    #   cov[i, j] = d_i delta_ij + (d r)_i v_j + v_i ((d r)_j + (r.(d r)) v_j)
    d = jnp.exp(logvar)                                   # (b, z)
    Dr = d * r_t                                          # (b, z)
    rDr = jnp.sum(r_t * Dr, axis=1, keepdims=True)        # (b, 1)
    w = Dr + rDr * v_t                                    # (b, z)

    lane = lax.broadcasted_iota(jnp.int32, (1, z_dim), 1)
    a_base = 3 * z_dim
    c_base = 3 * z_dim + z_dim * z_dim
    for i in range(z_dim):
        e_i = (lane == i).astype(jnp.float32)             # (1, z) identity row
        v_i = v_t[:, i:i + 1]                             # (b, 1)
        out_ref[:, a_base + i * z_dim:a_base + (i + 1) * z_dim] = (
            e_i + v_i * r_t)
        out_ref[:, c_base + i * z_dim:c_base + (i + 1) * z_dim] = (
            d[:, i:i + 1] * e_i + Dr[:, i:i + 1] * v_t + v_i * w)


def pack_params(params, z_dim, u_dim):
    """One-time weight regrouping / fusion (do NOT call per forward)."""
    h_dim = params["W1"].shape[1]
    WA, bA = params["WA"], params["bA"]                   # (h, 2z), (2z,)
    WAv, WAr = WA[:, :z_dim], WA[:, z_dim:]
    bAv, bAr = bA[:z_dim], bA[z_dim:]
    # fc_B: columns regrouped action-major so B_t @ u uses contiguous lane slices
    WB = (params["WB"].reshape(h_dim, z_dim, u_dim)
          .transpose(0, 2, 1).reshape(h_dim, u_dim * z_dim))
    bB = params["bB"].reshape(z_dim, u_dim).T.reshape(u_dim * z_dim)
    W_heads = jnp.concatenate([params["Wo"], WAv, WAr, WB], axis=1)
    b_heads = jnp.concatenate([params["bo"], bAv, bAr, bB])
    return {
        "W1": params["W1"],                               # (z, h)
        "Wfused": jnp.concatenate([params["W2"], W_heads], axis=1),  # (h, h+nh)
        "bfused": jnp.concatenate(
            [params["b1"], params["b2"], b_heads]).reshape(1, -1),   # (1, 2h+nh)
    }


@jax.jit
def transition_forward(z_bar_t, mu_t, logvar_t, u_t, packed):
    """Returns (mean, dist_dict) mirroring Transition.forward."""
    batch, z_dim = mu_t.shape
    u_dim = u_t.shape[1]
    h_dim = packed["W1"].shape[1]
    n_heads = packed["Wfused"].shape[1] - h_dim
    out_w = 3 * z_dim + 2 * z_dim * z_dim

    # one activation slab -> one input DMA descriptor for all per-step data
    acts = jnp.concatenate([z_bar_t, mu_t, logvar_t, u_t], axis=1)

    vspec = pl.BlockSpec(memory_space=pltpu.MemorySpace.VMEM)
    inputs = (acts, packed["W1"], packed["Wfused"], packed["bfused"])

    flops = 2 * batch * (z_dim * h_dim + h_dim * h_dim + h_dim * n_heads)
    bytes_accessed = 4 * (sum(int(x.size) for x in inputs) + batch * out_w)
    cost = pl.CostEstimate(flops=flops,
                           transcendentals=batch * 3 * z_dim,
                           bytes_accessed=bytes_accessed)

    out = pl.pallas_call(
        functools.partial(_transition_kernel,
                          z_dim=z_dim, u_dim=u_dim, h_dim=h_dim),
        out_shape=jax.ShapeDtypeStruct((batch, out_w), jnp.float32),
        in_specs=[vspec] * len(inputs),
        out_specs=vspec,
        cost_estimate=cost,
    )(*inputs)

    mean = out[:, 0:z_dim]
    v_t = out[:, z_dim:2 * z_dim]
    r_t = out[:, 2 * z_dim:3 * z_dim]
    zz = z_dim * z_dim
    A_t = out[:, 3 * z_dim:3 * z_dim + zz].reshape(batch, z_dim, z_dim)
    cov = out[:, 3 * z_dim + zz:].reshape(batch, z_dim, z_dim)
    dist = {"mean": mean, "logvar": logvar_t, "v": v_t, "r": r_t,
            "A": A_t, "cov": cov}
    return mean, dist


def _reference_forward(z_bar_t, mu_t, logvar_t, u_t, params, z_dim, u_dim):
    """Pure-JAX reference mirroring the PyTorch forward exactly."""
    h = jax.nn.relu(z_bar_t @ params["W1"] + params["b1"])
    h = jax.nn.relu(h @ params["W2"] + params["b2"])
    B_flat = h @ params["WB"] + params["bB"]
    o_t = h @ params["Wo"] + params["bo"]
    a = jax.nn.sigmoid(h @ params["WA"] + params["bA"])
    v_t, r_t = a[:, :z_dim], a[:, z_dim:]
    A_t = jnp.eye(z_dim)[None] + v_t[:, :, None] * r_t[:, None, :]
    B_t = B_flat.reshape(-1, z_dim, u_dim)
    mean = (jnp.einsum("bij,bj->bi", A_t, mu_t)
            + jnp.einsum("biu,bu->bi", B_t, u_t) + o_t)
    sigma = jax.vmap(jnp.diag)(jnp.exp(logvar_t))
    cov = A_t @ sigma @ jnp.swapaxes(A_t, 1, 2)
    return mean, v_t, r_t, A_t, cov


def init_params(key, z_dim, u_dim, h_dim):
    ortho = jax.nn.initializers.orthogonal()
    ks = jax.random.split(key, 10)
    return {
        # weights stored as (in, out)
        "W1": ortho(ks[0], (z_dim, h_dim), jnp.float32),
        "b1": 0.1 * jax.random.normal(ks[1], (h_dim,), jnp.float32),
        "W2": ortho(ks[2], (h_dim, h_dim), jnp.float32),
        "b2": 0.1 * jax.random.normal(ks[3], (h_dim,), jnp.float32),
        "WA": ortho(ks[4], (h_dim, 2 * z_dim), jnp.float32),
        "bA": 0.1 * jax.random.normal(ks[5], (2 * z_dim,), jnp.float32),
        "WB": ortho(ks[6], (h_dim, z_dim * u_dim), jnp.float32),
        "bB": 0.1 * jax.random.normal(ks[7], (z_dim * u_dim,), jnp.float32),
        "Wo": ortho(ks[8], (h_dim, z_dim), jnp.float32),
        "bo": 0.1 * jax.random.normal(ks[9], (z_dim,), jnp.float32),
    }


if __name__ == "__main__":
    batch, z_dim, u_dim, h_dim = 8, 4, 2, 32

    key = jax.random.PRNGKey(0)
    k_p, k_z, k_mu, k_lv, k_u = jax.random.split(key, 5)
    params = init_params(k_p, z_dim, u_dim, h_dim)
    packed = pack_params(params, z_dim, u_dim)          # one-time regrouping

    z_bar_t = jax.random.normal(k_z, (batch, z_dim), jnp.float32)
    mu_t = jax.random.normal(k_mu, (batch, z_dim), jnp.float32)       # q_z_t.mean
    logvar_t = jax.random.normal(k_lv, (batch, z_dim), jnp.float32)   # q_z_t.logvar
    u_t = jax.random.normal(k_u, (batch, u_dim), jnp.float32)

    mean, dist = transition_forward(z_bar_t, mu_t, logvar_t, u_t, packed)
    jax.block_until_ready(mean)
    jax.block_until_ready(dist["cov"])

    # correctness check against the pure-JAX reference of the PyTorch forward
    ref_mean, ref_v, ref_r, ref_A, ref_cov = _reference_forward(
        z_bar_t, mu_t, logvar_t, u_t, params, z_dim, u_dim)
    assert jnp.allclose(mean, ref_mean, rtol=1e-5, atol=1e-4)
    assert jnp.allclose(dist["v"], ref_v, rtol=1e-5, atol=1e-5)
    assert jnp.allclose(dist["r"], ref_r, rtol=1e-5, atol=1e-5)
    assert jnp.allclose(dist["A"], ref_A, rtol=1e-5, atol=1e-5)
    assert jnp.allclose(dist["cov"], ref_cov, rtol=1e-5, atol=1e-4)

    print("KERNEL_OK")
</pallas_src>

<mosaic_0001>
module attributes {stable_mosaic.version = 11 : i64} {
  func.func @_transition_kernel(%arg0: memref<8x14xf32, #tpu.memory_space<vmem>>, %arg1: memref<4x32xf32, #tpu.memory_space<vmem>>, %arg2: memref<32x52xf32, #tpu.memory_space<vmem>>, %arg3: memref<1x84xf32, #tpu.memory_space<vmem>>, %arg4: memref<8x44xf32, #tpu.memory_space<vmem>>) attributes {dimension_semantics = [], scalar_prefetch = 0 : i64, scratch_operands = 0 : i64, tpu.core_type = #tpu.core_type<tc>} {
    %c0 = arith.constant 0 : index
    %c0_0 = arith.constant 0 : index
    %0 = vector.load %arg0[%c0, %c0_0] : memref<8x14xf32, #tpu.memory_space<vmem>>, vector<8x14xf32>
    %1 = vector.extract_strided_slice %0 {offsets = [0, 0], sizes = [8, 4], strides = [1, 1]} : vector<8x14xf32> to vector<8x4xf32>
    %2 = vector.extract_strided_slice %0 {offsets = [0, 4], sizes = [8, 4], strides = [1, 1]} : vector<8x14xf32> to vector<8x4xf32>
    %3 = vector.extract_strided_slice %0 {offsets = [0, 8], sizes = [8, 4], strides = [1, 1]} : vector<8x14xf32> to vector<8x4xf32>
    %4 = vector.extract_strided_slice %0 {offsets = [0, 12], sizes = [8, 2], strides = [1, 1]} : vector<8x14xf32> to vector<8x2xf32>
    %c0_1 = arith.constant 0 : index
    %c0_2 = arith.constant 0 : index
    %5 = vector.load %arg3[%c0_1, %c0_2] : memref<1x84xf32, #tpu.memory_space<vmem>>, vector<1x32xf32>
    %c0_3 = arith.constant 0 : index
    %c32 = arith.constant 32 : index
    %6 = vector.load %arg3[%c0_3, %c32] : memref<1x84xf32, #tpu.memory_space<vmem>>, vector<1x32xf32>
    %c0_4 = arith.constant 0 : index
    %c64 = arith.constant 64 : index
    %7 = vector.load %arg3[%c0_4, %c64] : memref<1x84xf32, #tpu.memory_space<vmem>>, vector<1x20xf32>
    %8 = vector.extract_strided_slice %1 {offsets = [0, 0], sizes = [8, 1], strides = [1, 1]} : vector<8x4xf32> to vector<8x1xf32>
    %c0_5 = arith.constant 0 : index
    %c0_6 = arith.constant 0 : index
    %9 = vector.load %arg1[%c0_5, %c0_6] : memref<4x32xf32, #tpu.memory_space<vmem>>, vector<1x32xf32>
    %10 = vector.broadcast %8 : vector<8x1xf32> to vector<8x32xf32>
    %11 = vector.broadcast %9 : vector<1x32xf32> to vector<8x32xf32>
    %12 = arith.mulf %10, %11 : vector<8x32xf32>
    %13 = vector.broadcast %5 : vector<1x32xf32> to vector<8x32xf32>
    %14 = arith.addf %13, %12 : vector<8x32xf32>
    %15 = vector.extract_strided_slice %1 {offsets = [0, 1], sizes = [8, 1], strides = [1, 1]} : vector<8x4xf32> to vector<8x1xf32>
    %c1 = arith.constant 1 : index
    %c0_7 = arith.constant 0 : index
    %16 = vector.load %arg1[%c1, %c0_7] : memref<4x32xf32, #tpu.memory_space<vmem>>, vector<1x32xf32>
    %17 = vector.broadcast %15 : vector<8x1xf32> to vector<8x32xf32>
    %18 = vector.broadcast %16 : vector<1x32xf32> to vector<8x32xf32>
    %19 = arith.mulf %17, %18 : vector<8x32xf32>
    %20 = arith.addf %14, %19 : vector<8x32xf32>
    %21 = vector.extract_strided_slice %1 {offsets = [0, 2], sizes = [8, 1], strides = [1, 1]} : vector<8x4xf32> to vector<8x1xf32>
    %c2 = arith.constant 2 : index
    %c0_8 = arith.constant 0 : index
    %22 = vector.load %arg1[%c2, %c0_8] : memref<4x32xf32, #tpu.memory_space<vmem>>, vector<1x32xf32>
    %23 = vector.broadcast %21 : vector<8x1xf32> to vector<8x32xf32>
    %24 = vector.broadcast %22 : vector<1x32xf32> to vector<8x32xf32>
    %25 = arith.mulf %23, %24 : vector<8x32xf32>
    %26 = arith.addf %20, %25 : vector<8x32xf32>
    %27 = vector.extract_strided_slice %1 {offsets = [0, 3], sizes = [8, 1], strides = [1, 1]} : vector<8x4xf32> to vector<8x1xf32>
    %c3 = arith.constant 3 : index
    %c0_9 = arith.constant 0 : index
    %28 = vector.load %arg1[%c3, %c0_9] : memref<4x32xf32, #tpu.memory_space<vmem>>, vector<1x32xf32>
    %29 = vector.broadcast %27 : vector<8x1xf32> to vector<8x32xf32>
    %30 = vector.broadcast %28 : vector<1x32xf32> to vector<8x32xf32>
    %31 = arith.mulf %29, %30 : vector<8x32xf32>
    %32 = arith.addf %26, %31 : vector<8x32xf32>
    %cst = arith.constant 0.000000e+00 : f32
    %33 = vector.broadcast %cst : f32 to vector<8x32xf32>
    %34 = arith.maximumf %32, %33 : vector<8x32xf32>
    %c0_10 = arith.constant 0 : index
    %c0_11 = arith.constant 0 : index
    %35 = vector.load %arg2[%c0_10, %c0_11] : memref<32x52xf32, #tpu.memory_space<vmem>>, vector<32x32xf32>
    %cst_12 = arith.constant dense<0.000000e+00> : vector<8x32xf32>
    %36 = tpu.matmul %34, %35, %cst_12 {dimension_numbers = #tpu.dot_dimension_numbers<[1], [0], [0], [1], [0, 0, 1, 1], [], []>} : vector<8x32xf32>, vector<32x32xf32>, vector<8x32xf32> -> vector<8x32xf32>
    %37 = vector.broadcast %6 : vector<1x32xf32> to vector<8x32xf32>
    %38 = arith.addf %36, %37 : vector<8x32xf32>
    %cst_13 = arith.constant 0.000000e+00 : f32
    %39 = vector.broadcast %cst_13 : f32 to vector<8x32xf32>
    %40 = arith.maximumf %38, %39 : vector<8x32xf32>
    %c0_14 = arith.constant 0 : index
    %c32_15 = arith.constant 32 : index
    %41 = vector.load %arg2[%c0_14, %c32_15] : memref<32x52xf32, #tpu.memory_space<vmem>>, vector<32x20xf32>
    %cst_16 = arith.constant dense<0.000000e+00> : vector<8x20xf32>
    %42 = tpu.matmul %40, %41, %cst_16 {dimension_numbers = #tpu.dot_dimension_numbers<[1], [0], [0], [1], [0, 0, 1, 1], [], []>} : vector<8x32xf32>, vector<32x20xf32>, vector<8x20xf32> -> vector<8x20xf32>
    %43 = vector.broadcast %7 : vector<1x20xf32> to vector<8x20xf32>
    %44 = arith.addf %42, %43 : vector<8x20xf32>
    %45 = vector.extract_strided_slice %44 {offsets = [0, 0], sizes = [8, 4], strides = [1, 1]} : vector<8x20xf32> to vector<8x4xf32>
    %46 = vector.extract_strided_slice %44 {offsets = [0, 4], sizes = [8, 8], strides = [1, 1]} : vector<8x20xf32> to vector<8x8xf32>
    %47 = arith.negf %46 : vector<8x8xf32>
    %48 = math.exp %47 : vector<8x8xf32>
    %cst_17 = arith.constant 1.000000e+00 : f32
    %49 = vector.broadcast %cst_17 : f32 to vector<8x8xf32>
    %50 = arith.addf %49, %48 : vector<8x8xf32>
    %51 = arith.divf %49, %50 : vector<8x8xf32>
    %52 = vector.extract_strided_slice %51 {offsets = [0, 0], sizes = [8, 4], strides = [1, 1]} : vector<8x8xf32> to vector<8x4xf32>
    %53 = vector.extract_strided_slice %51 {offsets = [0, 4], sizes = [8, 4], strides = [1, 1]} : vector<8x8xf32> to vector<8x4xf32>
    %54 = vector.extract_strided_slice %44 {offsets = [0, 12], sizes = [8, 8], strides = [1, 1]} : vector<8x20xf32> to vector<8x8xf32>
    %55 = arith.mulf %53, %2 : vector<8x4xf32>
    %cst_18 = arith.constant dense<0.000000e+00> : vector<8xf32>
    %56 = vector.multi_reduction <add>, %55, %cst_18 [1] : vector<8x4xf32> to vector<8xf32>
    %57 = vector.shape_cast %56 : vector<8xf32> to vector<8x1xf32>
    %58 = vector.broadcast %57 : vector<8x1xf32> to vector<8x4xf32>
    %59 = arith.mulf %52, %58 : vector<8x4xf32>
    %60 = arith.addf %2, %59 : vector<8x4xf32>
    %cst_19 = arith.constant 0.000000e+00 : f32
    %61 = vector.broadcast %cst_19 : f32 to vector<8x4xf32>
    %62 = vector.extract_strided_slice %54 {offsets = [0, 0], sizes = [8, 4], strides = [1, 1]} : vector<8x8xf32> to vector<8x4xf32>
    %63 = vector.extract_strided_slice %4 {offsets = [0, 0], sizes = [8, 1], strides = [1, 1]} : vector<8x2xf32> to vector<8x1xf32>
    %64 = vector.broadcast %63 : vector<8x1xf32> to vector<8x4xf32>
    %65 = arith.mulf %62, %64 : vector<8x4xf32>
    %66 = arith.addf %61, %65 : vector<8x4xf32>
    %67 = vector.extract_strided_slice %54 {offsets = [0, 4], sizes = [8, 4], strides = [1, 1]} : vector<8x8xf32> to vector<8x4xf32>
    %68 = vector.extract_strided_slice %4 {offsets = [0, 1], sizes = [8, 1], strides = [1, 1]} : vector<8x2xf32> to vector<8x1xf32>
    %69 = vector.broadcast %68 : vector<8x1xf32> to vector<8x4xf32>
    %70 = arith.mulf %67, %69 : vector<8x4xf32>
    %71 = arith.addf %66, %70 : vector<8x4xf32>
    %72 = arith.addf %60, %71 : vector<8x4xf32>
    %73 = arith.addf %72, %45 : vector<8x4xf32>
    %c0_20 = arith.constant 0 : index
    %c0_21 = arith.constant 0 : index
    %74 = vector.load %arg4[%c0_20, %c0_21] : memref<8x44xf32, #tpu.memory_space<vmem>>, vector<8x4xf32>
    tpu.vector_store %arg4[%c0_20, %c0_21], %73 {strides = array<i32>} : memref<8x44xf32, #tpu.memory_space<vmem>>, vector<8x4xf32>,
    %c0_22 = arith.constant 0 : index
    %c4 = arith.constant 4 : index
    %75 = vector.load %arg4[%c0_22, %c4] : memref<8x44xf32, #tpu.memory_space<vmem>>, vector<8x8xf32>
    tpu.vector_store %arg4[%c0_22, %c4], %51 {strides = array<i32>} : memref<8x44xf32, #tpu.memory_space<vmem>>, vector<8x8xf32>,
    %76 = math.exp %3 : vector<8x4xf32>
    %77 = arith.mulf %76, %53 : vector<8x4xf32>
    %78 = arith.mulf %53, %77 : vector<8x4xf32>
    %cst_23 = arith.constant dense<0.000000e+00> : vector<8xf32>
    %79 = vector.multi_reduction <add>, %78, %cst_23 [1] : vector<8x4xf32> to vector<8xf32>
    %80 = vector.shape_cast %79 : vector<8xf32> to vector<8x1xf32>
    %81 = vector.broadcast %80 : vector<8x1xf32> to vector<8x4xf32>
    %82 = arith.mulf %81, %52 : vector<8x4xf32>
    %83 = arith.addf %77, %82 : vector<8x4xf32>
    %84 = tpu.iota {dimensions = array<i32: 1>} : vector<1x4xi32>
    %c0_i32 = arith.constant 0 : i32
    %85 = vector.broadcast %c0_i32 : i32 to vector<1x4xi32>
    %86 = arith.cmpi eq, %84, %85 : vector<1x4xi32>
    %87 = arith.extui %86 : vector<1x4xi1> to vector<1x4xi32>
    %88 = arith.sitofp %87 : vector<1x4xi32> to vector<1x4xf32>
    %89 = vector.extract_strided_slice %52 {offsets = [0, 0], sizes = [8, 1], strides = [1, 1]} : vector<8x4xf32> to vector<8x1xf32>
    %90 = vector.broadcast %89 : vector<8x1xf32> to vector<8x4xf32>
    %91 = arith.mulf %90, %53 : vector<8x4xf32>
    %92 = vector.broadcast %88 : vector<1x4xf32> to vector<8x4xf32>
    %93 = arith.addf %92, %91 : vector<8x4xf32>
    %c0_24 = arith.constant 0 : index
    %c12 = arith.constant 12 : index
    %94 = vector.load %arg4[%c0_24, %c12] : memref<8x44xf32, #tpu.memory_space<vmem>>, vector<8x4xf32>
    tpu.vector_store %arg4[%c0_24, %c12], %93 {strides = array<i32>} : memref<8x44xf32, #tpu.memory_space<vmem>>, vector<8x4xf32>,
    %95 = vector.extract_strided_slice %76 {offsets = [0, 0], sizes = [8, 1], strides = [1, 1]} : vector<8x4xf32> to vector<8x1xf32>
    %96 = vector.broadcast %95 : vector<8x1xf32> to vector<8x4xf32>
    %97 = vector.broadcast %88 : vector<1x4xf32> to vector<8x4xf32>
    %98 = arith.mulf %96, %97 : vector<8x4xf32>
    %99 = vector.extract_strided_slice %77 {offsets = [0, 0], sizes = [8, 1], strides = [1, 1]} : vector<8x4xf32> to vector<8x1xf32>
    %100 = vector.broadcast %99 : vector<8x1xf32> to vector<8x4xf32>
    %101 = arith.mulf %100, %52 : vector<8x4xf32>
    %102 = arith.addf %98, %101 : vector<8x4xf32>
    %103 = vector.broadcast %89 : vector<8x1xf32> to vector<8x4xf32>
    %104 = arith.mulf %103, %83 : vector<8x4xf32>
    %105 = arith.addf %102, %104 : vector<8x4xf32>
    %c0_25 = arith.constant 0 : index
    %c28 = arith.constant 28 : index
    %106 = vector.load %arg4[%c0_25, %c28] : memref<8x44xf32, #tpu.memory_space<vmem>>, vector<8x4xf32>
    tpu.vector_store %arg4[%c0_25, %c28], %105 {strides = array<i32>} : memref<8x44xf32, #tpu.memory_space<vmem>>, vector<8x4xf32>,
    %c1_i32 = arith.constant 1 : i32
    %107 = vector.broadcast %c1_i32 : i32 to vector<1x4xi32>
    %108 = arith.cmpi eq, %84, %107 : vector<1x4xi32>
    %109 = arith.extui %108 : vector<1x4xi1> to vector<1x4xi32>
    %110 = arith.sitofp %109 : vector<1x4xi32> to vector<1x4xf32>
    %111 = vector.extract_strided_slice %52 {offsets = [0, 1], sizes = [8, 1], strides = [1, 1]} : vector<8x4xf32> to vector<8x1xf32>
    %112 = vector.broadcast %111 : vector<8x1xf32> to vector<8x4xf32>
    %113 = arith.mulf %112, %53 : vector<8x4xf32>
    %114 = vector.broadcast %110 : vector<1x4xf32> to vector<8x4xf32>
    %115 = arith.addf %114, %113 : vector<8x4xf32>
    %c0_26 = arith.constant 0 : index
    %c16 = arith.constant 16 : index
    %116 = vector.load %arg4[%c0_26, %c16] : memref<8x44xf32, #tpu.memory_space<vmem>>, vector<8x4xf32>
    tpu.vector_store %arg4[%c0_26, %c16], %115 {strides = array<i32>} : memref<8x44xf32, #tpu.memory_space<vmem>>, vector<8x4xf32>,
    %117 = vector.extract_strided_slice %76 {offsets = [0, 1], sizes = [8, 1], strides = [1, 1]} : vector<8x4xf32> to vector<8x1xf32>
    %118 = vector.broadcast %117 : vector<8x1xf32> to vector<8x4xf32>
    %119 = vector.broadcast %110 : vector<1x4xf32> to vector<8x4xf32>
    %120 = arith.mulf %118, %119 : vector<8x4xf32>
    %121 = vector.extract_strided_slice %77 {offsets = [0, 1], sizes = [8, 1], strides = [1, 1]} : vector<8x4xf32> to vector<8x1xf32>
    %122 = vector.broadcast %121 : vector<8x1xf32> to vector<8x4xf32>
    %123 = arith.mulf %122, %52 : vector<8x4xf32>
    %124 = arith.addf %120, %123 : vector<8x4xf32>
    %125 = vector.broadcast %111 : vector<8x1xf32> to vector<8x4xf32>
    %126 = arith.mulf %125, %83 : vector<8x4xf32>
    %127 = arith.addf %124, %126 : vector<8x4xf32>
    %c0_27 = arith.constant 0 : index
    %c32_28 = arith.constant 32 : index
    %128 = vector.load %arg4[%c0_27, %c32_28] : memref<8x44xf32, #tpu.memory_space<vmem>>, vector<8x4xf32>
    tpu.vector_store %arg4[%c0_27, %c32_28], %127 {strides = array<i32>} : memref<8x44xf32, #tpu.memory_space<vmem>>, vector<8x4xf32>,
    %c2_i32 = arith.constant 2 : i32
    %129 = vector.broadcast %c2_i32 : i32 to vector<1x4xi32>
    %130 = arith.cmpi eq, %84, %129 : vector<1x4xi32>
    %131 = arith.extui %130 : vector<1x4xi1> to vector<1x4xi32>
    %132 = arith.sitofp %131 : vector<1x4xi32> to vector<1x4xf32>
    %133 = vector.extract_strided_slice %52 {offsets = [0, 2], sizes = [8, 1], strides = [1, 1]} : vector<8x4xf32> to vector<8x1xf32>
    %134 = vector.broadcast %133 : vector<8x1xf32> to vector<8x4xf32>
    %135 = arith.mulf %134, %53 : vector<8x4xf32>
    %136 = vector.broadcast %132 : vector<1x4xf32> to vector<8x4xf32>
    %137 = arith.addf %136, %135 : vector<8x4xf32>
    %c0_29 = arith.constant 0 : index
    %c20 = arith.constant 20 : index
    %138 = vector.load %arg4[%c0_29, %c20] : memref<8x44xf32, #tpu.memory_space<vmem>>, vector<8x4xf32>
    tpu.vector_store %arg4[%c0_29, %c20], %137 {strides = array<i32>} : memref<8x44xf32, #tpu.memory_space<vmem>>, vector<8x4xf32>,
    %139 = vector.extract_strided_slice %76 {offsets = [0, 2], sizes = [8, 1], strides = [1, 1]} : vector<8x4xf32> to vector<8x1xf32>
    %140 = vector.broadcast %139 : vector<8x1xf32> to vector<8x4xf32>
    %141 = vector.broadcast %132 : vector<1x4xf32> to vector<8x4xf32>
    %142 = arith.mulf %140, %141 : vector<8x4xf32>
    %143 = vector.extract_strided_slice %77 {offsets = [0, 2], sizes = [8, 1], strides = [1, 1]} : vector<8x4xf32> to vector<8x1xf32>
    %144 = vector.broadcast %143 : vector<8x1xf32> to vector<8x4xf32>
    %145 = arith.mulf %144, %52 : vector<8x4xf32>
    %146 = arith.addf %142, %145 : vector<8x4xf32>
    %147 = vector.broadcast %133 : vector<8x1xf32> to vector<8x4xf32>
    %148 = arith.mulf %147, %83 : vector<8x4xf32>
    %149 = arith.addf %146, %148 : vector<8x4xf32>
    %c0_30 = arith.constant 0 : index
    %c36 = arith.constant 36 : index
    %150 = vector.load %arg4[%c0_30, %c36] : memref<8x44xf32, #tpu.memory_space<vmem>>, vector<8x4xf32>
    tpu.vector_store %arg4[%c0_30, %c36], %149 {strides = array<i32>} : memref<8x44xf32, #tpu.memory_space<vmem>>, vector<8x4xf32>,
    %c3_i32 = arith.constant 3 : i32
    %151 = vector.broadcast %c3_i32 : i32 to vector<1x4xi32>
    %152 = arith.cmpi eq, %84, %151 : vector<1x4xi32>
    %153 = arith.extui %152 : vector<1x4xi1> to vector<1x4xi32>
    %154 = arith.sitofp %153 : vector<1x4xi32> to vector<1x4xf32>
    %155 = vector.extract_strided_slice %52 {offsets = [0, 3], sizes = [8, 1], strides = [1, 1]} : vector<8x4xf32> to vector<8x1xf32>
    %156 = vector.broadcast %155 : vector<8x1xf32> to vector<8x4xf32>
    %157 = arith.mulf %156, %53 : vector<8x4xf32>
    %158 = vector.broadcast %154 : vector<1x4xf32> to vector<8x4xf32>
    %159 = arith.addf %158, %157 : vector<8x4xf32>
    %c0_31 = arith.constant 0 : index
    %c24 = arith.constant 24 : index
    %160 = vector.load %arg4[%c0_31, %c24] : memref<8x44xf32, #tpu.memory_space<vmem>>, vector<8x4xf32>
    tpu.vector_store %arg4[%c0_31, %c24], %159 {strides = array<i32>} : memref<8x44xf32, #tpu.memory_space<vmem>>, vector<8x4xf32>,
    %161 = vector.extract_strided_slice %76 {offsets = [0, 3], sizes = [8, 1], strides = [1, 1]} : vector<8x4xf32> to vector<8x1xf32>
    %162 = vector.broadcast %161 : vector<8x1xf32> to vector<8x4xf32>
    %163 = vector.broadcast %154 : vector<1x4xf32> to vector<8x4xf32>
    %164 = arith.mulf %162, %163 : vector<8x4xf32>
    %165 = vector.extract_strided_slice %77 {offsets = [0, 3], sizes = [8, 1], strides = [1, 1]} : vector<8x4xf32> to vector<8x1xf32>
    %166 = vector.broadcast %165 : vector<8x1xf32> to vector<8x4xf32>
    %167 = arith.mulf %166, %52 : vector<8x4xf32>
    %168 = arith.addf %164, %167 : vector<8x4xf32>
    %169 = vector.broadcast %155 : vector<8x1xf32> to vector<8x4xf32>
    %170 = arith.mulf %169, %83 : vector<8x4xf32>
    %171 = arith.addf %168, %170 : vector<8x4xf32>
    %c0_32 = arith.constant 0 : index
    %c40 = arith.constant 40 : index
    %172 = vector.load %arg4[%c0_32, %c40] : memref<8x44xf32, #tpu.memory_space<vmem>>, vector<8x4xf32>
    tpu.vector_store %arg4[%c0_32, %c40], %171 {strides = array<i32>} : memref<8x44xf32, #tpu.memory_space<vmem>>, vector<8x4xf32>,
    return
  }
}

</mosaic_0001>

<llo_original>
// kernel: transition_forward.1
$region0: #{transition_forward.1}
  #allocation0 [shape = 'u32[]', space=smem, size = 0x4, offset = 0x4, fixed_abs, tag = 'smem constant byte address 0x4 - core index']
  #allocation1 [shape = 'u32[72,128]{1,0:T(1,128)}', space=vmem, size = 0x9000, scoped, tag = 'internal scratch']
  %s0 = inlined_call_operand.vmem [shape: f32[8,14], index: 0, kind: input, shape index: {}]
  %s1 = inlined_call_operand.vmem [shape: f32[4,32], index: 1, kind: input, shape index: {}]
  %s2 = inlined_call_operand.vmem [shape: f32[32,52], index: 2, kind: input, shape index: {}]
  %s3 = inlined_call_operand.vmem [shape: f32[1,84], index: 3, kind: input, shape index: {}]
  %s4 = inlined_call_operand.vmem [shape: f32[8,44], index: 4, kind: output, shape index: {}]
  %s5 = sld [smem:[#allocation0]]
  $region26: #{transition_forward.1} parent=0
    _
  %s7 = ssub.s32 1, %s5
  %s8 = scalar_select 0, %s7, %s5
  // Predicated region
  $region2: #{transition_forward.1} parent=0 // pred_check
    _
  $region3: #{transition_forward.1} parent=0 // pred_check_branch
    %10 = sbr.rel (0) target = $region5
  $region4: #{transition_forward.1} parent=0 // pred_region
    _
  $region5: #{transition_forward.1} parent=0 // pred_fallthru
    _
  // Predicated region
  $region6: #{transition_forward.1} parent=0 // pred_check
    _
  $region7: #{transition_forward.1} parent=0 // pred_check_branch
    %12 = sbr.rel (0) target = $region9
  $region8: #{transition_forward.1} parent=0 // pred_region
    _
  $region9: #{transition_forward.1} parent=0 // pred_fallthru
    _
  // Predicated region
  $region10: #{transition_forward.1} parent=0 // pred_check
    _
  $region11: #{transition_forward.1} parent=0 // pred_check_branch
    %14 = sbr.rel (0) target = $region13
  $region12: #{transition_forward.1} parent=0 // pred_region
    _
  $region13: #{transition_forward.1} parent=0 // pred_fallthru
    _
  // Predicated region
  $region14: #{transition_forward.1} parent=0 // pred_check
    _
  $region15: #{transition_forward.1} parent=0 // pred_check_branch
    %16 = sbr.rel (0) target = $region17
  $region16: #{transition_forward.1} parent=0 // pred_region
    _
  $region17: #{transition_forward.1} parent=0 // pred_fallthru
    _
  %v17 = vld [vmem:[%s0] sm:$0xff]
  %v18 = vld [vmem:[%s3] sm:$0x1]
  %v19 = vld [vmem:[%s1] sm:$0x1]
  %21 = vset.pattern.permute.xlu0 0
  %22 = vperm.xlu0 %21, %v17
  %v23 = vpop.permute.xlu0 %22
  %v25 = vperm.slane %v19, 0
  %v26 = vmul.f32 %v23, %v25
  %v28 = vperm.slane %v18, 0
  %v30 = vadd.f32 %v28, %v26
  %v31 = vld [vmem:[%s1 + $0x1] sm:$0x1]
  %32 = vset.pattern.permute.xlu0 1
  %33 = vperm.xlu0 %32, %v17
  %v34 = vpop.permute.xlu0 %33
  %v36 = vperm.slane %v31, 0
  %v37 = vmul.f32 %v34, %v36
  %v38 = vadd.f32 %v30, %v37
  %v39 = vld [vmem:[%s1 + $0x2] sm:$0x1]
  %40 = vset.pattern.permute.xlu0 2
  %41 = vperm.xlu0 %40, %v17
  %v42 = vpop.permute.xlu0 %41
  %v44 = vperm.slane %v39, 0
  %v45 = vmul.f32 %v42, %v44
  %v46 = vadd.f32 %v38, %v45
  %v47 = vld [vmem:[%s1 + $0x3] sm:$0x1]
  %48 = vset.pattern.permute.xlu0 3
  %49 = vperm.xlu0 %48, %v17
  %v50 = vpop.permute.xlu0 %49
  %v52 = vperm.slane %v47, 0
  %v53 = vmul.f32 %v50, %v52
  %v54 = vadd.f32 %v46, %v53
  %v55 = vmax.f32 %v54, 0.0
  %v56 = vld [vmem:[%s2] sm:$0xff]
  %v57 = vld [vmem:[%s2 + $0x8] sm:$0xff]
  %v58 = vld [vmem:[%s2 + $0x10] sm:$0xff]
  %v59 = vld [vmem:[%s2 + $0x18] sm:$0xff]
  %60 = vrot.lane.b32.xlu0 %v28, 96
  %v61 = vpop.permute.xlu0 %60
  %vm63 = vcmask 261120
  %v65 = vsel %vm63, %v55, 0
  %67 = vmatpush.msra.mxu0 0.0
  %68 = vmatpush.msra.mxu0 0.0
  %69 = vmatpush.msra.mxu0 0.0
  %70 = vmatpush.msra.mxu0 0.0
  %71 = vmatpush.msra.mxu0 0.0
  %72 = vmatpush.msra.mxu0 0.0
  %73 = vmatpush.msra.mxu0 0.0
  %74 = vmatpush.msra.mxu0 0.0
  %75 = vmatpush.msra.mxu0 0.0
  %76 = vmatpush.msra.mxu0 0.0
  %77 = vmatpush.msra.mxu0 0.0
  %78 = vmatpush.msra.mxu0 0.0
  %79 = vmatpush.msra.mxu0 %v59
  %80 = vmatpush.msra.mxu0 %v58
  %81 = vmatpush.msra.mxu0 %v57
  %82 = vmatpush.msra.mxu0 %v56
  %83 = vmatmul.f32.gmra.mxu0 %v65
  %v84 = vpop.f32.mrf.mxu0
  %v85 = vadd.f32 %v61, %v84
  %86 = vdwg.mxu0
  %v87 = vmax.f32 %v85, 0.0
  %92 = vrot.lane.b32.xlu0 %v56, 96
  %v93 = vpop.permute.xlu0 %92
  %94 = vrot.lane.b32.xlu0 %v57, 96
  %v95 = vpop.permute.xlu0 %94
  %96 = vrot.lane.b32.xlu0 %v58, 96
  %v97 = vpop.permute.xlu0 %96
  %98 = vrot.lane.b32.xlu0 %v59, 96
  %v99 = vpop.permute.xlu0 %98
  %104 = vrot.lane.b32.xlu0 %v28, 64
  %v105 = vpop.permute.xlu0 %104
  %v108 = vsel %vm63, %v87, 0
  %110 = vmatpush.msra.mxu0 0.0
  %111 = vmatpush.msra.mxu0 0.0
  %112 = vmatpush.msra.mxu0 0.0
  %113 = vmatpush.msra.mxu0 0.0
  %114 = vmatpush.msra.mxu0 0.0
  %115 = vmatpush.msra.mxu0 0.0
  %116 = vmatpush.msra.mxu0 0.0
  %117 = vmatpush.msra.mxu0 0.0
  %118 = vmatpush.msra.mxu0 0.0
  %119 = vmatpush.msra.mxu0 0.0
  %120 = vmatpush.msra.mxu0 0.0
  %121 = vmatpush.msra.mxu0 0.0
  %122 = vmatpush.msra.mxu0 %v99
  %123 = vmatpush.msra.mxu0 %v97
  %124 = vmatpush.msra.mxu0 %v95
  %125 = vmatpush.msra.mxu0 %v93
  %126 = vmatmul.f32.gmra.mxu0 %v108
  %v127 = vpop.f32.mrf.mxu0
  %v128 = vadd.f32 %v105, %v127
  %129 = vdwg.mxu0
  %v130 = vxor.u32 %v128, 2147483648
  %v131 = vmul.f32 %v130, 1.442695
  %v132 = vpow.pop %v131
  %v133 = vadd.f32 %v132, 1.0
  %v134 = vrcp.pop %v133
  %v135 = vmul.f32 %v133, %v134
  %v136 = vsub.f32 1.0, %v135
  %v137 = vmul.f32 %v134, %v136
  %v138 = vadd.f32 %v134, %v137
  %vm139 = vweird.f32 %v133
  %vm140 = vweird.f32 %v134
  %vm141 = vmor %vm139, %vm140
  %v142 = vsel %vm141, %v134, %v138
  %v143 = vand.u32 2147483647, %v133
  %vm144 = vcmp.eq.f32.partialorder %v143, 8.507059e+37
  %v145 = vand.u32 %v133, 2147483648
  %v146 = vor.u32 1.1754944e-38, %v145
  %v147 = vsel %vm144, %v146, %v142
  %v148 = vmul.f32 1.0, %v147
  %149 = vrot.lane.b32.xlu0 %v17, 4
  %v150 = vpop.permute.xlu0 %149
  %v152 = vmul.f32 %v148, %v150
  %154 = vrot.lane.b32.xlu0 %v152, 120
  %v155 = vpop.permute.xlu0 %154
  %vm157 = vcmask 31744
  %v158 = vsel %vm157, %v155, 0.0
  %159 = vadd.xlane.f32.xlu0 %v158
  %v160 = vpop.xlane.xlu0 %159
  %v161 = vmul.f32 %v148, %v160
  %v162 = vadd.f32 %v17, %v161
  %163 = vset.pattern.permute.xlu0 12
  %164 = vperm.xlu0 %163, %v17
  %v165 = vpop.permute.xlu0 %164
  %v167 = vmul.f32 %v128, %v165
  %v168 = vadd.f32 %v167, 0.0
  %169 = vset.pattern.permute.xlu0 13
  %170 = vperm.xlu0 %169, %v17
  %v171 = vpop.permute.xlu0 %170
  %v173 = vmul.f32 %v128, %v171
  %175 = vrot.lane.b32.xlu0 %v173, 124
  %v176 = vpop.permute.xlu0 %175
  %v178 = vadd.f32 %v168, %v176
  %180 = vrot.lane.b32.xlu0 %v178, 120
  %v181 = vpop.permute.xlu0 %180
  %v183 = vadd.f32 %v162, %v181
  %185 = vrot.lane.b32.xlu0 %v128, 4
  %v186 = vpop.permute.xlu0 %185
  %v188 = vadd.f32 %v183, %v186
  %190 = vrot.lane.b32.xlu0 %v188, 124
  %v191 = vpop.permute.xlu0 %190
  %193 = vst.msk [vmem:[%s4] sm:$0xff] %vm157, %v191
  %vm194 = vcmask 97312
  %195 = vst.msk [vmem:[%s4] sm:$0xff] %vm194, %v148
  %v196 = vmul.f32 %v17, 1.442695
  %v197 = vpow.pop %v196
  %v198 = vmul.f32 %v197, %v148
  %v199 = vmul.f32 %v148, %v198
  %201 = vrot.lane.b32.xlu0 %v199, 120
  %v202 = vpop.permute.xlu0 %201
  %v204 = vsel %vm157, %v202, 0.0
  %205 = vadd.xlane.f32.xlu0 %v204
  %v206 = vpop.xlane.xlu0 %205
  %v207 = vmul.f32 %v206, %v148
  %209 = vrot.lane.b32.xlu0 %v207, 4
  %v210 = vpop.permute.xlu0 %209
  %v212 = vadd.f32 %v198, %v210
  %v213 = vlaneseq
  %v214 = vand.u32 %v213, 127
  %vm215 = vcmp.eq.s32.totalorder %v214, 0
  %v216 = vsel %vm215, 1, 0
  %v217 = vcvt.s32.f32 %v216
  %219 = vset.pattern.permute.xlu0 4
  %220 = vperm.xlu0 %219, %v148
  %v221 = vpop.permute.xlu0 %220
  %v223 = vmul.f32 %v221, %v148
  %225 = vrot.lane.b32.xlu0 %v223, 120
  %v226 = vpop.permute.xlu0 %225
  %v228 = vadd.f32 %v217, %v226
  %230 = vrot.lane.b32.xlu0 %v228, 12
  %v231 = vpop.permute.xlu0 %230
  %vm233 = vcmask 130144
  %234 = vst.msk [vmem:[%s4] sm:$0xff] %vm233, %v231
  %236 = vset.pattern.permute.xlu0 8
  %237 = vperm.xlu0 %236, %v197
  %v238 = vpop.permute.xlu0 %237
  %v240 = vmul.f32 %v238, %v217
  %242 = vset.pattern.permute.xlu0 8
  %243 = vperm.xlu0 %242, %v198
  %v244 = vpop.permute.xlu0 %243
  %v246 = vmul.f32 %v244, %v148
  %248 = vrot.lane.b32.xlu0 %v246, 124
  %v249 = vpop.permute.xlu0 %248
  %v251 = vadd.f32 %v240, %v249
  %v252 = vmul.f32 %v221, %v212
  %254 = vrot.lane.b32.xlu0 %v252, 120
  %v255 = vpop.permute.xlu0 %254
  %v257 = vadd.f32 %v251, %v255
  %259 = vrot.lane.b32.xlu0 %v257, 28
  %v260 = vpop.permute.xlu0 %259
  %vm262 = vcmask 261344
  %263 = vst.msk [vmem:[%s4] sm:$0xff] %vm262, %v260
  %vm264 = vcmp.eq.s32.totalorder %v214, 1
  %v265 = vsel %vm264, 1, 0
  %v266 = vcvt.s32.f32 %v265
  %267 = vset.pattern.permute.xlu0 5
  %268 = vperm.xlu0 %267, %v148
  %v269 = vpop.permute.xlu0 %268
  %v271 = vmul.f32 %v269, %v148
  %273 = vrot.lane.b32.xlu0 %v271, 120
  %v274 = vpop.permute.xlu0 %273
  %v276 = vadd.f32 %v266, %v274
  %278 = vrot.lane.b32.xlu0 %v276, 16
  %v279 = vpop.permute.xlu0 %278
  %vm281 = vcmask 162944
  %282 = vst.msk [vmem:[%s4] sm:$0xff] %vm281, %v279
  %283 = vset.pattern.permute.xlu0 9
  %284 = vperm.xlu0 %283, %v197
  %v285 = vpop.permute.xlu0 %284
  %v287 = vmul.f32 %v285, %v266
  %288 = vset.pattern.permute.xlu0 9
  %289 = vperm.xlu0 %288, %v198
  %v290 = vpop.permute.xlu0 %289
  %v292 = vmul.f32 %v290, %v148
  %294 = vrot.lane.b32.xlu0 %v292, 124
  %v295 = vpop.permute.xlu0 %294
  %v297 = vadd.f32 %v287, %v295
  %v298 = vmul.f32 %v269, %v212
  %300 = vrot.lane.b32.xlu0 %v298, 120
  %v301 = vpop.permute.xlu0 %300
  %v303 = vadd.f32 %v297, %v301
  %305 = vrot.lane.b32.xlu0 %v303, 32
  %v306 = vpop.permute.xlu0 %305
  %vm308 = vcmask 294144
  %309 = vst.msk [vmem:[%s4] sm:$0xff] %vm308, %v306
  %vm310 = vcmp.eq.s32.totalorder %v214, 2
  %v311 = vsel %vm310, 1, 0
  %v312 = vcvt.s32.f32 %v311
  %313 = vset.pattern.permute.xlu0 6
  %314 = vperm.xlu0 %313, %v148
  %v315 = vpop.permute.xlu0 %314
  %v317 = vmul.f32 %v315, %v148
  %319 = vrot.lane.b32.xlu0 %v317, 120
  %v320 = vpop.permute.xlu0 %319
  %v322 = vadd.f32 %v312, %v320
  %324 = vrot.lane.b32.xlu0 %v322, 20
  %v325 = vpop.permute.xlu0 %324
  %vm327 = vcmask 195744
  %328 = vst.msk [vmem:[%s4] sm:$0xff] %vm327, %v325
  %329 = vset.pattern.permute.xlu0 10
  %330 = vperm.xlu0 %329, %v197
  %v331 = vpop.permute.xlu0 %330
  %v333 = vmul.f32 %v331, %v312
  %334 = vset.pattern.permute.xlu0 10
  %335 = vperm.xlu0 %334, %v198
  %v336 = vpop.permute.xlu0 %335
  %v338 = vmul.f32 %v336, %v148
  %340 = vrot.lane.b32.xlu0 %v338, 124
  %v341 = vpop.permute.xlu0 %340
  %v343 = vadd.f32 %v333, %v341
  %v344 = vmul.f32 %v315, %v212
  %346 = vrot.lane.b32.xlu0 %v344, 120
  %v347 = vpop.permute.xlu0 %346
  %v349 = vadd.f32 %v343, %v347
  %351 = vrot.lane.b32.xlu0 %v349, 36
  %v352 = vpop.permute.xlu0 %351
  %vm354 = vcmask 326944
  %355 = vst.msk [vmem:[%s4] sm:$0xff] %vm354, %v352
  %vm356 = vcmp.eq.s32.totalorder %v214, 3
  %v357 = vsel %vm356, 1, 0
  %v358 = vcvt.s32.f32 %v357
  %359 = vset.pattern.permute.xlu0 7
  %360 = vperm.xlu0 %359, %v148
  %v361 = vpop.permute.xlu0 %360
  %v363 = vmul.f32 %v361, %v148
  %365 = vrot.lane.b32.xlu0 %v363, 120
  %v366 = vpop.permute.xlu0 %365
  %v368 = vadd.f32 %v358, %v366
  %370 = vrot.lane.b32.xlu0 %v368, 24
  %v371 = vpop.permute.xlu0 %370
  %vm373 = vcmask 228544
  %374 = vst.msk [vmem:[%s4] sm:$0xff] %vm373, %v371
  %375 = vset.pattern.permute.xlu0 11
  %376 = vperm.xlu0 %375, %v197
  %v377 = vpop.permute.xlu0 %376
  %v379 = vmul.f32 %v377, %v358
  %380 = vset.pattern.permute.xlu0 11
  %381 = vperm.xlu0 %380, %v198
  %v382 = vpop.permute.xlu0 %381
  %v384 = vmul.f32 %v382, %v148
  %386 = vrot.lane.b32.xlu0 %v384, 124
  %v387 = vpop.permute.xlu0 %386
  %v389 = vadd.f32 %v379, %v387
  %v390 = vmul.f32 %v361, %v212
  %392 = vrot.lane.b32.xlu0 %v390, 120
  %v393 = vpop.permute.xlu0 %392
  %v395 = vadd.f32 %v389, %v393
  %397 = vrot.lane.b32.xlu0 %v395, 40
  %v398 = vpop.permute.xlu0 %397
  %vm400 = vcmask 359744
  %401 = vst.msk [vmem:[%s4] sm:$0xff] %vm400, %v398
  // Predicated region
  $region18: #{transition_forward.1} parent=0 // pred_check
    _
  $region19: #{transition_forward.1} parent=0 // pred_check_branch
    %403 = sbr.rel (0) target = $region21
  $region20: #{transition_forward.1} parent=0 // pred_region
    _
  $region21: #{transition_forward.1} parent=0 // pred_fallthru
    _
  // Predicated region
  $region22: #{transition_forward.1} parent=0 // pred_check
    _
  $region23: #{transition_forward.1} parent=0 // pred_check_branch
    %405 = sbr.rel (0) target = $region25
  $region24: #{transition_forward.1} parent=0 // pred_region
    _
  $region25: #{transition_forward.1} parent=0 // pred_fallthru
    _

</llo_original>
